<compile_context>
chip_gen: v6e
topology: v6e:2x2x1
jax: 0.10.0
libtpu: 0.0.40
codegen_flags: <defaults>
</compile_context>

<pallas_src>
import jax
import jax.numpy as jnp
from jax.experimental import pallas as pl
from jax.experimental.pallas import tpu as pltpu


def lift_kernel(x_ref, att_ref, o_ref):
    # x_ref   : (2*F_in, tile_e)  stacked gathered features, edges on lanes
    #           rows [0:F_in)      = x[src].T
    #           rows [F_in:2*F_in) = x[tgt].T
    # att_ref : (2*F_in, 1)       learnable attention vector (broadcast over lanes)
    # o_ref   : (1, tile_e)       lane-dense output row
    #
    # concat(x[src], x[tgt]) @ att  ==  sum over the 2*F_in (sublane) axis of
    # x_stacked * att.  VPU multiply + XLU sublane reduce; no MXU.
    s = jnp.sum(x_ref[...] * att_ref[...], axis=0, keepdims=True)
    o_ref[...] = jnp.maximum(s, 0.0).astype(o_ref.dtype)


def lift_layer_forward(node_signal, edge_index, att, *, tile_e=1024):
    """node_signal: [N, F_in] f32, edge_index: [2, E] int32, att: [2*F_in, 1] f32.

    Returns edge_signal: [E, 1] f32 == relu(concat(x[src], x[tgt], 1) @ att).
    """
    N, F_in = node_signal.shape
    E = edge_index.shape[1]
    dtype = node_signal.dtype

    # Keep the lane axis dense: tile_e must be a multiple of 128.
    tile_e = max(128, (tile_e // 128) * 128)
    num_tiles = pl.cdiv(E, tile_e)
    e_pad = num_tiles * tile_e

    # ---- XLA-side glue: data-dependent row gather (node_signal[src/tgt]). ----
    src = edge_index[0]
    tgt = edge_index[1]
    if e_pad != E:
        pad = e_pad - E
        zeros = jnp.zeros((pad,), dtype=src.dtype)  # index 0 is always valid
        src = jnp.concatenate([src, zeros])
        tgt = jnp.concatenate([tgt, zeros])

    nodes_t = node_signal.T  # (F_in, N): features on sublanes, nodes on lanes
    # Stacked, transposed gathered features: (2*F_in, E_pad), edges on lanes.
    x_stacked = jnp.concatenate(
        [jnp.take(nodes_t, src, axis=1), jnp.take(nodes_t, tgt, axis=1)],
        axis=0,
    )

    out_t = pl.pallas_call(
        lift_kernel,
        out_shape=jax.ShapeDtypeStruct((1, e_pad), dtype),
        grid_spec=pltpu.PrefetchScalarGridSpec(
            num_scalar_prefetch=0,
            grid=(num_tiles,),
            in_specs=[
                # Full feature extent, one lane-tile of edges per grid step.
                pl.BlockSpec((2 * F_in, tile_e), lambda i: (0, i)),
                # att is tiny and constant across the grid -> stays resident.
                pl.BlockSpec((2 * F_in, 1), lambda i: (0, 0)),
            ],
            out_specs=pl.BlockSpec((1, tile_e), lambda i: (0, i)),
        ),
        compiler_params=pltpu.CompilerParams(
            dimension_semantics=("parallel",),
            vmem_limit_bytes=32 * 1024 * 1024,
        ),
    )(x_stacked, att)

    # Drop the padded lanes and restore the (E, 1) layout of the PyTorch module.
    return out_t[0, :E].reshape(E, 1)


def xavier_uniform_like_torch(key, shape, gain):
    """PyTorch xavier_uniform_ on a (2*F_in, 1) tensor: fan_out=shape[0], fan_in=shape[1]."""
    fan_out, fan_in = shape[0], shape[1]
    bound = gain * jnp.sqrt(6.0 / (fan_in + fan_out))
    return jax.random.uniform(key, shape, jnp.float32, minval=-bound, maxval=bound)


if __name__ == "__main__":
    key = jax.random.PRNGKey(0)
    k_x, k_e, k_att = jax.random.split(key, 3)

    N = 64       # number of nodes
    F_in = 16    # node feature dim
    E = 4000     # number of edges (deliberately NOT a multiple of tile_e)

    node_signal = jax.random.normal(k_x, (N, F_in), dtype=jnp.float32)
    edge_index = jax.random.randint(k_e, (2, E), 0, N, dtype=jnp.int32)

    # Deterministic parameter init matching LiftLayer.reset_parameters
    # (xavier_uniform with gain = calculate_gain('relu') = sqrt(2)).
    gain = jnp.sqrt(2.0)
    att = xavier_uniform_like_torch(k_att, (2 * F_in, 1), gain)

    out = lift_layer_forward(node_signal, edge_index, att, tile_e=1024)
    out = jax.block_until_ready(out)

    # Pure-JAX reference (same math as the PyTorch forward).
    x_cat = jnp.concatenate(
        [node_signal[edge_index[0]], node_signal[edge_index[1]]], axis=1)
    ref = jax.nn.relu(x_cat @ att)
    assert out.shape == (E, 1)
    assert jnp.allclose(out, ref, atol=1e-5, rtol=1e-5)

    print("KERNEL_OK")
</pallas_src>

<mosaic_0001>
module attributes {stable_mosaic.version = 11 : i64} {
  func.func @lift_kernel(%arg0: i32, %arg1: memref<32x1024xf32, #tpu.memory_space<vmem>>, %arg2: memref<32x1xf32, #tpu.memory_space<vmem>>, %arg3: memref<1x1024xf32, #tpu.memory_space<vmem>>) attributes {dimension_semantics = [#tpu.dimension_semantics<parallel>], iteration_bounds = array<i64: 4>, scalar_prefetch = 0 : i64, scratch_operands = 0 : i64, tpu.core_type = #tpu.core_type<tc>, window_params = [{transform_indices = @transform_0, window_bounds = array<i64: 32, 1024>}, {pipeline_mode = #tpu.pipeline_mode<synchronous>, transform_indices = @transform_1, window_bounds = array<i64: 32, 1>}, {transform_indices = @transform_2, window_bounds = array<i64: 1, 1024>}]} {
    %c0 = arith.constant 0 : index
    %c0_0 = arith.constant 0 : index
    %0 = vector.load %arg1[%c0, %c0_0] : memref<32x1024xf32, #tpu.memory_space<vmem>>, vector<32x1024xf32>
    %c0_1 = arith.constant 0 : index
    %c0_2 = arith.constant 0 : index
    %1 = vector.load %arg2[%c0_1, %c0_2] : memref<32x1xf32, #tpu.memory_space<vmem>>, vector<32x1xf32>
    %2 = vector.broadcast %1 : vector<32x1xf32> to vector<32x1024xf32>
    %3 = arith.mulf %0, %2 : vector<32x1024xf32>
    %cst = arith.constant dense<0.000000e+00> : vector<1024xf32>
    %4 = vector.multi_reduction <add>, %3, %cst [0] : vector<32x1024xf32> to vector<1024xf32>
    %5 = vector.shape_cast %4 : vector<1024xf32> to vector<1x1024xf32>
    %cst_3 = arith.constant 0.000000e+00 : f32
    %6 = vector.broadcast %cst_3 : f32 to vector<1x1024xf32>
    %7 = arith.maximumf %5, %6 : vector<1x1024xf32>
    %c0_4 = arith.constant 0 : index
    %c0_5 = arith.constant 0 : index
    %8 = vector.load %arg3[%c0_4, %c0_5] : memref<1x1024xf32, #tpu.memory_space<vmem>>, vector<1x1024xf32>
    tpu.vector_store %arg3[%c0_4, %c0_5], %7 {strides = array<i32>} : memref<1x1024xf32, #tpu.memory_space<vmem>>, vector<1x1024xf32>,
    return
  }
  func.func @transform_0(%arg0: i32) -> (i32, i32) {
    %c0_i32 = arith.constant 0 : i32
    %c0_i32_0 = arith.constant 0 : i32
    return %c0_i32, %arg0 : i32, i32
  }
  func.func @transform_1(%arg0: i32) -> (i32, i32) {
    %c0_i32 = arith.constant 0 : i32
    %c0_i32_0 = arith.constant 0 : i32
    %c0_i32_1 = arith.constant 0 : i32
    return %c0_i32, %c0_i32_0 : i32, i32
  }
  func.func @transform_2(%arg0: i32) -> (i32, i32) {
    %c0_i32 = arith.constant 0 : i32
    %c0_i32_0 = arith.constant 0 : i32
    return %c0_i32, %arg0 : i32, i32
  }
}

</mosaic_0001>

<llo_original>
// kernel: tpu_custom_call.1
$region0: #{tpu_custom_call.1}
  #allocation0 [shape = 'u32[]', space=smem, size = 0x4, offset = 0x4, fixed_abs, tag = 'smem constant byte address 0x4 - core index']
  #allocation1 [shape = 'u32[144,128]{1,0:T(1,128)}', space=vmem, size = 0x12000, scoped, tag = 'internal scratch']
  %s0 = inlined_call_operand.hbm [shape: f32[32,4096], index: 0, kind: input, shape index: {}]
  %s1 = inlined_call_operand.vmem [shape: f32[32,1], index: 1, kind: input, shape index: {}]
  %s2 = inlined_call_operand.hbm [shape: f32[1,4096], index: 2, kind: output, shape index: {}]
  %s3 = sld [smem:[#allocation0]]
  $region45: #{tpu_custom_call.1} parent=0
    _
  %s5 = ssub.s32 1, %s3
  %s6 = scalar_select 0, %s5, %s3
  $region1: #{tpu_custom_call.1} parent=0
    #allocation2 [shape = 'u8[262144]{0}', space=vmem, size = 0x40000, scoped, tag = 'input window, operand 0']
    #allocation3 [shape = 's32[2]{0}', space=sflag, size = 0x8, scoped, tag = 'scoped memory for tpu_custom_call.1']
    #allocation4 [shape = 's32[2]{0}', space=sflag, size = 0x8, scoped, tag = 'scoped memory for tpu_custom_call.1']
    #allocation5 [shape = 'u8[8192]{0}', space=vmem, size = 0x2000, scoped, tag = 'output window, operand 0']
    %7 = vsyncpa [#allocation3], 0
    %s8 = scalar_lea.sflag [#allocation3], 1
    %9 = vsyncpa %s8, 0
    %10 = vsyncpa [#allocation4], 0
    %s11 = scalar_lea.sflag [#allocation4], 1
    %12 = vsyncpa %s11, 0
    loop: start=0, step=1, limit=6
    $region2: #{tpu_custom_call.1} parent=1 // loop_pre_header
      _
    $region3: #{tpu_custom_call.1} parent=1 // loop_header
      %s14 = sphi 0, %s18
      %p15 = scmp.ge.s32.totalorder %s14, 6
      %s24 = sphi 0, %s26
      %s27 = sphi 0, %s24
      %s28 = sphi 0, %s27
      %s44 = sphi 0, %s28
      %s48 = sphi 0, %s48
      %s50 = sphi 0, %s48
      %s51 = sphi 0, %s50
      %s65 = sphi 0, %s51
      %s71 = sphi 0, %s73
      %s74 = sphi 0, %s71
      %s75 = sphi 0, %s74
      %s91 = sphi 0, %s75
    $region4: #{tpu_custom_call.1} parent=1 // loop_header_branch
      %17 = sbr.rel (%p15) target = $region8
    $region5: #{tpu_custom_call.1} parent=1 // loop_body
      %s19 = ssub.s32 %s14, 1
      %s20 = ssub.s32 %s14, 2
      %s21 = sadd.s32 %s14, 1
      %s22 = ssub.s32 %s14, %s21
      %p23 = scmp.eq.s32.totalorder %s22, 0
      %s25 = sadd.s32 %s24, 1
      %s26 = scalar_select %p23, %s24, %s25
      %p29 = pneg %p23
      %p30 = scmp.eq.s32.totalorder %s14, 3
      %p31 = por %p29, %p30
      %p32 = scmp.ne.s32.totalorder %s24, %s27
      %p33 = scmp.eq.s32.totalorder %s14, 0
      %p34 = por %p32, %p33
      %p35 = scmp.ne.s32.totalorder %s24, %s27
      %p36 = scmp.eq.s32.totalorder %s19, 3
      %p37 = por %p35, %p36
      %p38 = scmp.ne.s32.totalorder %s27, %s28
      %p39 = scmp.eq.s32.totalorder %s19, 0
      %p40 = por %p38, %p39
      %p41 = scmp.ne.s32.totalorder %s27, %s28
      %p42 = scmp.eq.s32.totalorder %s20, 3
      %p43 = por %p41, %p42
      %p45 = scmp.ne.s32.totalorder %s28, %s44
      %p46 = scmp.eq.s32.totalorder %s20, 0
      %p47 = por %p45, %p46
      %s49 = sadd.s32 %s48, 1
      %p52 = scmp.eq.s32.totalorder %s14, 3
      %p53 = scmp.ne.s32.totalorder %s48, %s50
      %p54 = scmp.eq.s32.totalorder %s14, 0
      %p55 = por %p53, %p54
      %p56 = scmp.ne.s32.totalorder %s48, %s50
      %p57 = scmp.eq.s32.totalorder %s19, 3
      %p58 = por %p56, %p57
      %p59 = scmp.ne.s32.totalorder %s50, %s51
      %p60 = scmp.eq.s32.totalorder %s19, 0
      %p61 = por %p59, %p60
      %p62 = scmp.ne.s32.totalorder %s50, %s51
      %p63 = scmp.eq.s32.totalorder %s20, 3
      %p64 = por %p62, %p63
      %p66 = scmp.ne.s32.totalorder %s51, %s65
      %p67 = scmp.eq.s32.totalorder %s20, 0
      %p68 = por %p66, %p67
      %s69 = ssub.s32 %s14, %s21
      %p70 = scmp.eq.s32.totalorder %s69, 0
      %s72 = sadd.s32 %s71, 1
      %s73 = scalar_select %p70, %s71, %s72
      %p76 = pneg %p70
      %p77 = scmp.eq.s32.totalorder %s14, 3
      %p78 = por %p76, %p77
      %p79 = scmp.ne.s32.totalorder %s71, %s74
      %p80 = scmp.eq.s32.totalorder %s14, 0
      %p81 = por %p79, %p80
      %p82 = scmp.ne.s32.totalorder %s71, %s74
      %p83 = scmp.eq.s32.totalorder %s19, 3
      %p84 = por %p82, %p83
      %p85 = scmp.ne.s32.totalorder %s74, %s75
      %p86 = scmp.eq.s32.totalorder %s19, 0
      %p87 = por %p85, %p86
      %p88 = scmp.ne.s32.totalorder %s74, %s75
      %p89 = scmp.eq.s32.totalorder %s20, 3
      %p90 = por %p88, %p89
      %p92 = scmp.ne.s32.totalorder %s75, %s91
      %p93 = scmp.eq.s32.totalorder %s20, 0
      %p94 = por %p92, %p93
      %p95 = scmp.le.s32.totalorder 1, %s14
      %p96 = scmp.lt.s32.totalorder %s14, 5
      %p97 = pnand %p95, %p96
      %p98 = pneg %p97
      // Predicated region
      $region9: #{tpu_custom_call.1} parent=5 // pred_check
        _
      $region10: #{tpu_custom_call.1} parent=5 // pred_check_branch
        %100 = sbr.rel (%p97) target = $region12
      $region11: #{tpu_custom_call.1} parent=5 // pred_region
        %s101 = ssub.s32 %s14, 1
        // Predicated region
        $region13: #{tpu_custom_call.1} parent=11 // pred_check
          %p102 = pneg %p61
        $region14: #{tpu_custom_call.1} parent=11 // pred_check_branch
          %104 = sbr.rel (%p102) target = $region16
        $region15: #{tpu_custom_call.1} parent=11 // pred_region
          _
        $region16: #{tpu_custom_call.1} parent=11 // pred_fallthru
          _
      $region12: #{tpu_custom_call.1} parent=5 // pred_fallthru
        _
      %p105 = scmp.lt.s32.totalorder %s14, 4
      // Predicated region
      $region17: #{tpu_custom_call.1} parent=5 // pred_check
        %p106 = pneg %p105
      $region18: #{tpu_custom_call.1} parent=5 // pred_check_branch
        %108 = sbr.rel (%p106) target = $region20
      $region19: #{tpu_custom_call.1} parent=5 // pred_region
        // Predicated region
        $region21: #{tpu_custom_call.1} parent=19 // pred_check
          %p109 = pneg %p34
        $region22: #{tpu_custom_call.1} parent=19 // pred_check_branch
          %111 = sbr.rel (%p109) target = $region24
        $region23: #{tpu_custom_call.1} parent=19 // pred_region
          %s112 = sand.u32 %s24, 1
          %s113 = scalar_lea.sflag [#allocation3], %s112
          %s114 = sand.u32 %s24, 1
          %s115 = smul.addr %s114, 256
          %s116 = scalar_lea.vmem [#allocation2], %s115
          %s117 = smul.u32 8, %s14
          %s119 = ssub.s32 4096, 4096
          %120 = vsyncadd %s113, %s119
          %s121 = smul.addr %s117, 128
          %s122 = scalar_lea.hbm %s0, %s121
          %s123 = sshll.u32 %s116, 4
          %s124 = int_to_ptr.vmem [resolvable:$true] %s123
          %129 = dma.hbm_to_vmem [thread:$0]  %s122, 4096, %s124, %s113, 4096, 1024, 64
        $region24: #{tpu_custom_call.1} parent=19 // pred_fallthru
          _
      $region20: #{tpu_custom_call.1} parent=5 // pred_fallthru
        _
      %p130 = scmp.le.s32.totalorder 1, %s14
      %p131 = scmp.lt.s32.totalorder %s14, 5
      %p132 = pnand %p130, %p131
      %p133 = pneg %p132
      // Predicated region
      $region25: #{tpu_custom_call.1} parent=5 // pred_check
        _
      $region26: #{tpu_custom_call.1} parent=5 // pred_check_branch
        %135 = sbr.rel (%p132) target = $region28
      $region27: #{tpu_custom_call.1} parent=5 // pred_region
        %s136 = ssub.s32 %s14, 1
        %s137 = sand.u32 %s27, 1
        %s138 = scalar_lea.sflag [#allocation3], %s137
        %s139 = sand.u32 %s27, 1
        %s140 = smul.addr %s139, 256
        %s141 = scalar_lea.vmem [#allocation2], %s140
        // Predicated region
        $region29: #{tpu_custom_call.1} parent=27 // pred_check
          %p142 = pneg %p40
        $region30: #{tpu_custom_call.1} parent=27 // pred_check_branch
          %144 = sbr.rel (%p142) target = $region32
        $region31: #{tpu_custom_call.1} parent=27 // pred_region
          %145 = dma.done %s138, 4096
        $region32: #{tpu_custom_call.1} parent=27 // pred_fallthru
          _
        %s146 = sand.u32 %s27, 1
        %s147 = scalar_lea.sflag [#allocation3], %s146
        %s148 = sand.u32 %s27, 1
        %s149 = smul.addr %s148, 256
        %s150 = scalar_lea.vmem [#allocation2], %s149
        %p151 = pneg %p40
        %p152 = pneg %p37
        %p153 = pneg %p61
        %p154 = pneg %p58
        %p155 = pneg %p87
        %p156 = pneg %p84
        %s157 = sand.u32 %s74, 1
        %s158 = scalar_lea.sflag [#allocation4], %s157
        %s159 = sand.u32 %s74, 1
        %s160 = smul.addr %s159, 8
        %s161 = scalar_lea.vmem [#allocation5], %s160
        %s162 = smul.u32 8, %s19
        %s163 = smul.u32 8, %s19
        %v164 = vld [vmem:[%s141] sm:$0xff]
        %v165 = vld [vmem:[%s141 + $0x8] sm:$0xff]
        %v166 = vld [vmem:[%s141 + $0x10] sm:$0xff]
        %v167 = vld [vmem:[%s141 + $0x18] sm:$0xff]
        %v168 = vld [vmem:[%s141 + $0x20] sm:$0xff]
        %v169 = vld [vmem:[%s141 + $0x28] sm:$0xff]
        %v170 = vld [vmem:[%s141 + $0x30] sm:$0xff]
        %v171 = vld [vmem:[%s141 + $0x38] sm:$0xff]
        %v172 = vld [vmem:[%s141 + $0x40] sm:$0xff]
        %v173 = vld [vmem:[%s141 + $0x48] sm:$0xff]
        %v174 = vld [vmem:[%s141 + $0x50] sm:$0xff]
        %v175 = vld [vmem:[%s141 + $0x58] sm:$0xff]
        %v176 = vld [vmem:[%s141 + $0x60] sm:$0xff]
        %v177 = vld [vmem:[%s141 + $0x68] sm:$0xff]
        %v178 = vld [vmem:[%s141 + $0x70] sm:$0xff]
        %v179 = vld [vmem:[%s141 + $0x78] sm:$0xff]
        %v180 = vld [vmem:[%s141 + $0x80] sm:$0xff]
        %v181 = vld [vmem:[%s141 + $0x88] sm:$0xff]
        %v182 = vld [vmem:[%s141 + $0x90] sm:$0xff]
        %v183 = vld [vmem:[%s141 + $0x98] sm:$0xff]
        %v184 = vld [vmem:[%s141 + $0xa0] sm:$0xff]
        %v185 = vld [vmem:[%s141 + $0xa8] sm:$0xff]
        %v186 = vld [vmem:[%s141 + $0xb0] sm:$0xff]
        %v187 = vld [vmem:[%s141 + $0xb8] sm:$0xff]
        %v188 = vld [vmem:[%s141 + $0xc0] sm:$0xff]
        %v189 = vld [vmem:[%s141 + $0xc8] sm:$0xff]
        %v190 = vld [vmem:[%s141 + $0xd0] sm:$0xff]
        %v191 = vld [vmem:[%s141 + $0xd8] sm:$0xff]
        %v192 = vld [vmem:[%s141 + $0xe0] sm:$0xff]
        %v193 = vld [vmem:[%s141 + $0xe8] sm:$0xff]
        %v194 = vld [vmem:[%s141 + $0xf0] sm:$0xff]
        %v195 = vld [vmem:[%s141 + $0xf8] sm:$0xff]
        %v196 = vld [vmem:[%s1] sm:$0xff]
        %v197 = vld [vmem:[%s1 + $0x8] sm:$0xff]
        %v198 = vld [vmem:[%s1 + $0x10] sm:$0xff]
        %v199 = vld [vmem:[%s1 + $0x18] sm:$0xff]
        %201 = vset.pattern.permute.xlu0 0
        %202 = vperm.xlu0 %201, %v196
        %v203 = vpop.permute.xlu0 %202
        %206 = vset.pattern.permute.xlu0 0
        %207 = vperm.xlu0 %206, %v197
        %v208 = vpop.permute.xlu0 %207
        %211 = vset.pattern.permute.xlu0 0
        %212 = vperm.xlu0 %211, %v198
        %v213 = vpop.permute.xlu0 %212
        %216 = vset.pattern.permute.xlu0 0
        %217 = vperm.xlu0 %216, %v199
        %v218 = vpop.permute.xlu0 %217
        %v220 = vmul.f32 %v164, %v203
        %v221 = vmul.f32 %v165, %v203
        %v222 = vmul.f32 %v166, %v203
        %v223 = vmul.f32 %v167, %v203
        %v224 = vmul.f32 %v168, %v203
        %v225 = vmul.f32 %v169, %v203
        %v226 = vmul.f32 %v170, %v203
        %v227 = vmul.f32 %v171, %v203
        %v228 = vmul.f32 %v172, %v208
        %v229 = vmul.f32 %v173, %v208
        %v230 = vmul.f32 %v174, %v208
        %v231 = vmul.f32 %v175, %v208
        %v232 = vmul.f32 %v176, %v208
        %v233 = vmul.f32 %v177, %v208
        %v234 = vmul.f32 %v178, %v208
        %v235 = vmul.f32 %v179, %v208
        %v236 = vmul.f32 %v180, %v213
        %v237 = vmul.f32 %v181, %v213
        %v238 = vmul.f32 %v182, %v213
        %v239 = vmul.f32 %v183, %v213
        %v240 = vmul.f32 %v184, %v213
        %v241 = vmul.f32 %v185, %v213
        %v242 = vmul.f32 %v186, %v213
        %v243 = vmul.f32 %v187, %v213
        %v244 = vmul.f32 %v188, %v218
        %v245 = vmul.f32 %v189, %v218
        %v246 = vmul.f32 %v190, %v218
        %v247 = vmul.f32 %v191, %v218
        %v248 = vmul.f32 %v192, %v218
        %v249 = vmul.f32 %v193, %v218
        %v250 = vmul.f32 %v194, %v218
        %v251 = vmul.f32 %v195, %v218
        %v252 = vadd.f32 %v220, %v228
        %v253 = vadd.f32 %v252, %v236
        %v254 = vadd.f32 %v253, %v244
        %v255 = vrot.slane %v254, 4
        %v256 = vadd.f32 %v254, %v255
        %v257 = vrot.slane %v256, 2
        %v258 = vadd.f32 %v256, %v257
        %v259 = vrot.slane %v258, 1
        %v260 = vadd.f32 %v258, %v259
        %v261 = vadd.f32 %v221, %v229
        %v262 = vadd.f32 %v261, %v237
        %v263 = vadd.f32 %v262, %v245
        %v264 = vrot.slane %v263, 4
        %v265 = vadd.f32 %v263, %v264
        %v266 = vrot.slane %v265, 2
        %v267 = vadd.f32 %v265, %v266
        %v268 = vrot.slane %v267, 1
        %v269 = vadd.f32 %v267, %v268
        %v270 = vadd.f32 %v222, %v230
        %v271 = vadd.f32 %v270, %v238
        %v272 = vadd.f32 %v271, %v246
        %v273 = vrot.slane %v272, 4
        %v274 = vadd.f32 %v272, %v273
        %v275 = vrot.slane %v274, 2
        %v276 = vadd.f32 %v274, %v275
        %v277 = vrot.slane %v276, 1
        %v278 = vadd.f32 %v276, %v277
        %v279 = vadd.f32 %v223, %v231
        %v280 = vadd.f32 %v279, %v239
        %v281 = vadd.f32 %v280, %v247
        %v282 = vrot.slane %v281, 4
        %v283 = vadd.f32 %v281, %v282
        %v284 = vrot.slane %v283, 2
        %v285 = vadd.f32 %v283, %v284
        %v286 = vrot.slane %v285, 1
        %v287 = vadd.f32 %v285, %v286
        %v288 = vadd.f32 %v224, %v232
        %v289 = vadd.f32 %v288, %v240
        %v290 = vadd.f32 %v289, %v248
        %v291 = vrot.slane %v290, 4
        %v292 = vadd.f32 %v290, %v291
        %v293 = vrot.slane %v292, 2
        %v294 = vadd.f32 %v292, %v293
        %v295 = vrot.slane %v294, 1
        %v296 = vadd.f32 %v294, %v295
        %v297 = vadd.f32 %v225, %v233
        %v298 = vadd.f32 %v297, %v241
        %v299 = vadd.f32 %v298, %v249
        %v300 = vrot.slane %v299, 4
        %v301 = vadd.f32 %v299, %v300
        %v302 = vrot.slane %v301, 2
        %v303 = vadd.f32 %v301, %v302
        %v304 = vrot.slane %v303, 1
        %v305 = vadd.f32 %v303, %v304
        %v306 = vadd.f32 %v226, %v234
        %v307 = vadd.f32 %v306, %v242
        %v308 = vadd.f32 %v307, %v250
        %v309 = vrot.slane %v308, 4
        %v310 = vadd.f32 %v308, %v309
        %v311 = vrot.slane %v310, 2
        %v312 = vadd.f32 %v310, %v311
        %v313 = vrot.slane %v312, 1
        %v314 = vadd.f32 %v312, %v313
        %v315 = vadd.f32 %v227, %v235
        %v316 = vadd.f32 %v315, %v243
        %v317 = vadd.f32 %v316, %v251
        %v318 = vrot.slane %v317, 4
        %v319 = vadd.f32 %v317, %v318
        %v320 = vrot.slane %v319, 2
        %v321 = vadd.f32 %v319, %v320
        %v322 = vrot.slane %v321, 1
        %v323 = vadd.f32 %v321, %v322
        %v324 = vmax.f32 %v260, 0.0
        %v325 = vmax.f32 %v269, 0.0
        %v326 = vmax.f32 %v278, 0.0
        %v327 = vmax.f32 %v287, 0.0
        %v328 = vmax.f32 %v296, 0.0
        %v329 = vmax.f32 %v305, 0.0
        %v330 = vmax.f32 %v314, 0.0
        %v331 = vmax.f32 %v323, 0.0
        %v340 = vcombine.low %v324, %v325
        %v341 = vcombine.low %v326, %v327
        %v342 = vcombine.low %v328, %v329
        %v343 = vcombine.low %v330, %v331
        %v345 = vunpack.c.l.s4 1966171168
        %v346 = vunpack.c.0.s8 %v345
        %v347 = vlaneseq
        %v348 = vshrl.u32 %v347, 7
        %v349 = vsub.s32 %v346, %v348
        %v350 = vrot.slane %v340, %v349
        %v352 = vunpack.c.l.s4 1966171168
        %v353 = vunpack.c.0.s8 %v352
        %v354 = vlaneseq
        %v355 = vshrl.u32 %v354, 7
        %v356 = vsub.s32 %v353, %v355
        %v357 = vrot.slane %v341, %v356
        %v359 = vunpack.c.l.s4 1966171168
        %v360 = vunpack.c.0.s8 %v359
        %v361 = vlaneseq
        %v362 = vshrl.u32 %v361, 7
        %v363 = vsub.s32 %v360, %v362
        %v364 = vrot.slane %v342, %v363
        %v366 = vunpack.c.l.s4 1966171168
        %v367 = vunpack.c.0.s8 %v366
        %v368 = vlaneseq
        %v369 = vshrl.u32 %v368, 7
        %v370 = vsub.s32 %v367, %v369
        %v371 = vrot.slane %v343, %v370
        %v372 = vcombine.low %v350, %v357
        %v373 = vcombine.low %v364, %v371
        %v375 = vunpack.c.l.s4 1966171168
        %v376 = vunpack.c.0.s8 %v375
        %v377 = vlaneseq
        %v378 = vshrl.u32 %v377, 7
        %v379 = vsub.s32 %v376, %v378
        %v380 = vrot.slane %v372, %v379
        %v382 = vunpack.c.l.s4 1966171168
        %v383 = vunpack.c.0.s8 %v382
        %v384 = vlaneseq
        %v385 = vshrl.u32 %v384, 7
        %v386 = vsub.s32 %v383, %v385
        %v387 = vrot.slane %v373, %v386
        %v388 = vcombine.low %v380, %v387
        %390 = vst [vmem:[%s161] sm:$0xff] %v388
        %s391 = sand.u32 %s74, 1
        %s392 = scalar_lea.sflag [#allocation4], %s391
        %s393 = sand.u32 %s74, 1
        %s394 = smul.addr %s393, 8
        %s395 = scalar_lea.vmem [#allocation5], %s394
        // Predicated region
        $region33: #{tpu_custom_call.1} parent=27 // pred_check
          %p396 = pneg %p84
        $region34: #{tpu_custom_call.1} parent=27 // pred_check_branch
          %398 = sbr.rel (%p396) target = $region36
        $region35: #{tpu_custom_call.1} parent=27 // pred_region
          %s399 = smul.u32 8, %s19
          %s401 = ssub.s32 128, 128
          %402 = vsyncadd %s392, %s401
          %s403 = smul.addr %s399, 16
          %s404 = scalar_lea.hbm %s2, %s403
          %s406 = sshll.u32 %s395, 4
          %s407 = int_to_ptr.vmem [resolvable:$true] %s406
          %409 = dma.vmem_to_hbm [thread:$0]  %s407, 128, %s404, %s392
        $region36: #{tpu_custom_call.1} parent=27 // pred_fallthru
          _
      $region28: #{tpu_custom_call.1} parent=5 // pred_fallthru
        _
      %p410 = scmp.le.s32.totalorder 2, %s14
      // Predicated region
      $region37: #{tpu_custom_call.1} parent=5 // pred_check
        %p411 = pneg %p410
      $region38: #{tpu_custom_call.1} parent=5 // pred_check_branch
        %413 = sbr.rel (%p411) target = $region40
      $region39: #{tpu_custom_call.1} parent=5 // pred_region
        %s414 = ssub.s32 %s14, 2
        // Predicated region
        $region41: #{tpu_custom_call.1} parent=39 // pred_check
          %p415 = pneg %p90
        $region42: #{tpu_custom_call.1} parent=39 // pred_check_branch
          %417 = sbr.rel (%p415) target = $region44
        $region43: #{tpu_custom_call.1} parent=39 // pred_region
          %s418 = sand.u32 %s75, 1
          %s419 = scalar_lea.sflag [#allocation4], %s418
          %s420 = sand.u32 %s75, 1
          %s421 = smul.addr %s420, 8
          %s422 = scalar_lea.vmem [#allocation5], %s421
          %423 = dma.done %s419, 128
        $region44: #{tpu_custom_call.1} parent=39 // pred_fallthru
          _
      $region40: #{tpu_custom_call.1} parent=5 // pred_fallthru
        _
    $region6: #{tpu_custom_call.1} parent=1 // loop_footer
      %s18 = sadd.s32 1, %s14
    $region7: #{tpu_custom_call.1} parent=1 // loop_footer_branch
      %13 = sbr.rel target = $region3
    $region8: #{tpu_custom_call.1} parent=1 // loop_exit
      _
    %424 = vsyncpa [#allocation3], 1
    %s425 = scalar_lea.sflag [#allocation3], 1
    %426 = vsyncpa %s425, 1
    %427 = vsyncpa [#allocation4], 1
    %s428 = scalar_lea.sflag [#allocation4], 1
    %429 = vsyncpa %s428, 1

</llo_original>
